<compile_context>
chip_gen: v6e
topology: v6e:2x2x1
jax: 0.10.0
libtpu: 0.0.40
codegen_flags: <defaults>
</compile_context>

<pallas_src>
import jax
import jax.numpy as jnp
from jax.experimental import pallas as pl
from jax.experimental.pallas import tpu as pltpu

NEG_SLOPE = 0.01   # PyTorch nn.LeakyReLU default
OUT_PAD = 8        # output padded 6 -> 8 columns (legal block: last dim == full array dim)


def _round_up(n, m):
    return ((n + m - 1) // m) * m


def mlp_kernel(x_ref, w1_ref, b1_ref, w2_ref, b2_ref, w3_ref, b3_ref, o_ref):
    """Fused 3-layer MLP on one batch tile. x is f32 (cast in-kernel), weights bf16, acc f32."""
    neg = jnp.float32(NEG_SLOPE)

    # Layer 1: (tb, 12) @ (12, 256) + (1, 256); x cast to bf16 in-kernel (opt #2).
    x = x_ref[...].astype(jnp.bfloat16)
    h = jnp.dot(x, w1_ref[...], preferred_element_type=jnp.float32)
    h = h + b1_ref[...]
    h = jnp.maximum(h, neg * h)               # LeakyReLU (2 VALU ops)
    h = h.astype(jnp.bfloat16)                # bf16 into the next MXU pass

    # Layer 2: (tb, 256) @ (256, 256) + (1, 256)
    h = jnp.dot(h, w2_ref[...], preferred_element_type=jnp.float32)
    h = h + b2_ref[...]
    h = jnp.maximum(h, neg * h)               # LeakyReLU
    h = h.astype(jnp.bfloat16)

    # Layer 3 (zero-padded to 8 output lanes):
    out = jnp.dot(h, w3_ref[...], preferred_element_type=jnp.float32)
    out = out + b3_ref[...]
    o_ref[...] = out.astype(o_ref.dtype)


def prepare_params(w1, b1, w2, b2, w3, b3, *, out_pad=OUT_PAD):
    """One-time (model-load) weight prep: zero-pad layer-3 to out_pad lanes, cast weights to bf16."""
    h_dim = w3.shape[0]
    out_dim = w3.shape[1]
    w3p = jnp.zeros((h_dim, out_pad), jnp.float32).at[:, :out_dim].set(w3)
    b3p = jnp.zeros((1, out_pad), jnp.float32).at[:, :out_dim].set(b3)
    return (
        w1.astype(jnp.bfloat16),
        b1.astype(jnp.float32),
        w2.astype(jnp.bfloat16),
        b2.astype(jnp.float32),
        w3p.astype(jnp.bfloat16),
        b3p,
        out_dim,
    )


def nn_model_forward(x, params, *, tile_b=2048):
    """x: (B, 12) f32; params from prepare_params(). Returns (B, 6) f32."""
    w1b, b1, w2b, b2, w3b, b3p, out_dim = params
    B, in_dim = x.shape
    h_dim = w1b.shape[1]          # 256
    out_pad = w3b.shape[1]        # 8

    # Batch tile: multiple of 8 sublanes; default 2048 amortizes per-step overhead and
    # keeps the per-step working set (< ~8 MiB) comfortably inside v7x's 64 MiB VMEM.
    tb = min(tile_b, _round_up(B, 8))
    tb = _round_up(tb, 8)
    B_pad = _round_up(B, tb)
    if B_pad != B:
        x = jnp.pad(x, ((0, B_pad - B), (0, 0)))

    grid = (B_pad // tb,)
    flops = 2 * B_pad * (in_dim * h_dim + h_dim * h_dim + h_dim * out_pad)
    bytes_accessed = int(
        x.size * 4
        + w1b.size * 2 + w2b.size * 2 + w3b.size * 2
        + b1.size * 4 + b2.size * 4 + b3p.size * 4
        + B_pad * out_pad * 4
    )

    out = pl.pallas_call(
        mlp_kernel,
        out_shape=jax.ShapeDtypeStruct((B_pad, out_pad), jnp.float32),
        grid=grid,
        in_specs=[
            pl.BlockSpec((tb, in_dim), lambda i: (i, 0)),       # x tile (f32): marches over batch
            pl.BlockSpec((in_dim, h_dim), lambda i: (0, 0)),    # w1: resident
            pl.BlockSpec((1, h_dim), lambda i: (0, 0)),         # b1: resident
            pl.BlockSpec((h_dim, h_dim), lambda i: (0, 0)),     # w2: resident
            pl.BlockSpec((1, h_dim), lambda i: (0, 0)),         # b2: resident
            pl.BlockSpec((h_dim, out_pad), lambda i: (0, 0)),   # w3 (padded to 8): resident
            pl.BlockSpec((1, out_pad), lambda i: (0, 0)),       # b3 (padded to 8): resident
        ],
        out_specs=pl.BlockSpec((tb, out_pad), lambda i: (i, 0)),
        compiler_params=pltpu.CompilerParams(
            dimension_semantics=("parallel",),
            vmem_limit_bytes=32 * 1024 * 1024,
        ),
        cost_estimate=pl.CostEstimate(
            flops=flops, transcendentals=0, bytes_accessed=bytes_accessed),
    )(x, w1b, b1, w2b, b2, w3b, b3p)

    # Trailing slice is now over a narrow (B_pad, 8) buffer — negligible traffic.
    return out[:B, :out_dim]


def init_params(key):
    """Deterministic PyTorch-style (uniform +/- 1/sqrt(fan_in)) init."""
    ks = jax.random.split(key, 6)

    def lin(kw, kb, fan_in, fan_out):
        bound = 1.0 / jnp.sqrt(jnp.float32(fan_in))
        w = jax.random.uniform(kw, (fan_in, fan_out), jnp.float32, -bound, bound)
        b = jax.random.uniform(kb, (1, fan_out), jnp.float32, -bound, bound)
        return w, b

    w1, b1 = lin(ks[0], ks[1], 12, 256)
    w2, b2 = lin(ks[2], ks[3], 256, 256)
    w3, b3 = lin(ks[4], ks[5], 256, 6)
    return w1, b1, w2, b2, w3, b3


def ref_forward_bf16(x, w1, b1, w2, b2, w3, b3):
    """Pure-JAX reference mirroring the kernel's bf16-input / f32-accum pipeline."""
    def leaky(v):
        return jnp.where(v > 0, v, NEG_SLOPE * v)

    h = jnp.dot(x.astype(jnp.bfloat16), w1.astype(jnp.bfloat16),
                preferred_element_type=jnp.float32) + b1
    h = leaky(h).astype(jnp.bfloat16)
    h = jnp.dot(h, w2.astype(jnp.bfloat16),
                preferred_element_type=jnp.float32) + b2
    h = leaky(h).astype(jnp.bfloat16)
    out = jnp.dot(h, w3.astype(jnp.bfloat16),
                  preferred_element_type=jnp.float32) + b3
    return out


if __name__ == "__main__":
    key = jax.random.PRNGKey(0)
    k_x, k_p = jax.random.split(key)
    w1, b1, w2, b2, w3, b3 = init_params(k_p)
    params = prepare_params(w1, b1, w2, b2, w3, b3)   # one-time weight prep (hoisted)

    # Case 1: tiny batch (matches the shipped use case), single grid step.
    x_small = jax.random.normal(k_x, (8, 12), jnp.float32)
    out_small = jax.block_until_ready(nn_model_forward(x_small, params))
    ref_small = ref_forward_bf16(x_small, w1, b1, w2, b2, w3, b3)
    assert out_small.shape == (8, 6)
    assert jnp.allclose(out_small, ref_small, atol=2e-2, rtol=2e-2)

    # Case 2: non-multiple batch with a small tile -> exercises padding + multi-step grid.
    x_big = jax.random.normal(k_x, (200, 12), jnp.float32)
    out_big = jax.block_until_ready(nn_model_forward(x_big, params, tile_b=64))
    ref_big = ref_forward_bf16(x_big, w1, b1, w2, b2, w3, b3)
    assert out_big.shape == (200, 6)
    assert jnp.allclose(out_big, ref_big, atol=2e-2, rtol=2e-2)

    print("KERNEL_OK")
</pallas_src>

<mosaic_0001>
module attributes {stable_mosaic.version = 11 : i64} {
  func.func @mlp_kernel(%arg0: i32, %arg1: memref<8x12xf32, #tpu.memory_space<vmem>>, %arg2: memref<12x256xbf16, #tpu.memory_space<vmem>>, %arg3: memref<1x256xf32, #tpu.memory_space<vmem>>, %arg4: memref<256x256xbf16, #tpu.memory_space<vmem>>, %arg5: memref<1x256xf32, #tpu.memory_space<vmem>>, %arg6: memref<256x8xbf16, #tpu.memory_space<vmem>>, %arg7: memref<1x8xf32, #tpu.memory_space<vmem>>, %arg8: memref<8x8xf32, #tpu.memory_space<vmem>>) attributes {dimension_semantics = [#tpu.dimension_semantics<parallel>], iteration_bounds = array<i64: 1>, scalar_prefetch = 0 : i64, scratch_operands = 0 : i64, tpu.core_type = #tpu.core_type<tc>, window_params = [{transform_indices = @transform_0, window_bounds = array<i64: 8, 12>}, {pipeline_mode = #tpu.pipeline_mode<synchronous>, transform_indices = @transform_1, window_bounds = array<i64: 12, 256>}, {pipeline_mode = #tpu.pipeline_mode<synchronous>, transform_indices = @transform_2, window_bounds = array<i64: 1, 256>}, {pipeline_mode = #tpu.pipeline_mode<synchronous>, transform_indices = @transform_3, window_bounds = array<i64: 256, 256>}, {pipeline_mode = #tpu.pipeline_mode<synchronous>, transform_indices = @transform_4, window_bounds = array<i64: 1, 256>}, {pipeline_mode = #tpu.pipeline_mode<synchronous>, transform_indices = @transform_5, window_bounds = array<i64: 256, 8>}, {pipeline_mode = #tpu.pipeline_mode<synchronous>, transform_indices = @transform_6, window_bounds = array<i64: 1, 8>}, {transform_indices = @transform_7, window_bounds = array<i64: 8, 8>}]} {
    %c0 = arith.constant 0 : index
    %c0_0 = arith.constant 0 : index
    %0 = vector.load %arg1[%c0, %c0_0] : memref<8x12xf32, #tpu.memory_space<vmem>>, vector<8x12xf32>
    %1 = arith.truncf %0 : vector<8x12xf32> to vector<8x12xbf16>
    %c0_1 = arith.constant 0 : index
    %c0_2 = arith.constant 0 : index
    %2 = vector.load %arg2[%c0_1, %c0_2] : memref<12x256xbf16, #tpu.memory_space<vmem>>, vector<12x256xbf16>
    %cst = arith.constant dense<0.000000e+00> : vector<8x256xf32>
    %3 = tpu.matmul %1, %2, %cst {dimension_numbers = #tpu.dot_dimension_numbers<[1], [0], [0], [1], [0, 0, 1, 1], [], []>} : vector<8x12xbf16>, vector<12x256xbf16>, vector<8x256xf32> -> vector<8x256xf32>
    %c0_3 = arith.constant 0 : index
    %c0_4 = arith.constant 0 : index
    %4 = vector.load %arg3[%c0_3, %c0_4] : memref<1x256xf32, #tpu.memory_space<vmem>>, vector<1x256xf32>
    %5 = vector.broadcast %4 : vector<1x256xf32> to vector<8x256xf32>
    %6 = arith.addf %3, %5 : vector<8x256xf32>
    %cst_5 = arith.constant 0.00999999977 : f32
    %7 = vector.broadcast %cst_5 : f32 to vector<8x256xf32>
    %8 = arith.mulf %7, %6 : vector<8x256xf32>
    %9 = arith.maximumf %6, %8 : vector<8x256xf32>
    %10 = arith.truncf %9 : vector<8x256xf32> to vector<8x256xbf16>
    %c0_6 = arith.constant 0 : index
    %c0_7 = arith.constant 0 : index
    %11 = vector.load %arg4[%c0_6, %c0_7] : memref<256x256xbf16, #tpu.memory_space<vmem>>, vector<256x256xbf16>
    %cst_8 = arith.constant dense<0.000000e+00> : vector<8x256xf32>
    %12 = tpu.matmul %10, %11, %cst_8 {dimension_numbers = #tpu.dot_dimension_numbers<[1], [0], [0], [1], [0, 0, 1, 1], [], []>} : vector<8x256xbf16>, vector<256x256xbf16>, vector<8x256xf32> -> vector<8x256xf32>
    %c0_9 = arith.constant 0 : index
    %c0_10 = arith.constant 0 : index
    %13 = vector.load %arg5[%c0_9, %c0_10] : memref<1x256xf32, #tpu.memory_space<vmem>>, vector<1x256xf32>
    %14 = vector.broadcast %13 : vector<1x256xf32> to vector<8x256xf32>
    %15 = arith.addf %12, %14 : vector<8x256xf32>
    %cst_11 = arith.constant 0.00999999977 : f32
    %16 = vector.broadcast %cst_11 : f32 to vector<8x256xf32>
    %17 = arith.mulf %16, %15 : vector<8x256xf32>
    %18 = arith.maximumf %15, %17 : vector<8x256xf32>
    %19 = arith.truncf %18 : vector<8x256xf32> to vector<8x256xbf16>
    %c0_12 = arith.constant 0 : index
    %c0_13 = arith.constant 0 : index
    %20 = vector.load %arg6[%c0_12, %c0_13] : memref<256x8xbf16, #tpu.memory_space<vmem>>, vector<256x8xbf16>
    %cst_14 = arith.constant dense<0.000000e+00> : vector<8x8xf32>
    %21 = tpu.matmul %19, %20, %cst_14 {dimension_numbers = #tpu.dot_dimension_numbers<[1], [0], [0], [1], [0, 0, 1, 1], [], []>} : vector<8x256xbf16>, vector<256x8xbf16>, vector<8x8xf32> -> vector<8x8xf32>
    %c0_15 = arith.constant 0 : index
    %c0_16 = arith.constant 0 : index
    %22 = vector.load %arg7[%c0_15, %c0_16] : memref<1x8xf32, #tpu.memory_space<vmem>>, vector<1x8xf32>
    %23 = vector.broadcast %22 : vector<1x8xf32> to vector<8x8xf32>
    %24 = arith.addf %21, %23 : vector<8x8xf32>
    %c0_17 = arith.constant 0 : index
    %c0_18 = arith.constant 0 : index
    %25 = vector.load %arg8[%c0_17, %c0_18] : memref<8x8xf32, #tpu.memory_space<vmem>>, vector<8x8xf32>
    tpu.vector_store %arg8[%c0_17, %c0_18], %24 {strides = array<i32>} : memref<8x8xf32, #tpu.memory_space<vmem>>, vector<8x8xf32>,
    return
  }
  func.func @transform_0(%arg0: i32) -> (i32, i32) {
    %c0_i32 = arith.constant 0 : i32
    %c0_i32_0 = arith.constant 0 : i32
    return %arg0, %c0_i32 : i32, i32
  }
  func.func @transform_1(%arg0: i32) -> (i32, i32) {
    %c0_i32 = arith.constant 0 : i32
    %c0_i32_0 = arith.constant 0 : i32
    %c0_i32_1 = arith.constant 0 : i32
    return %c0_i32, %c0_i32_0 : i32, i32
  }
  func.func @transform_2(%arg0: i32) -> (i32, i32) {
    %c0_i32 = arith.constant 0 : i32
    %c0_i32_0 = arith.constant 0 : i32
    %c0_i32_1 = arith.constant 0 : i32
    return %c0_i32, %c0_i32_0 : i32, i32
  }
  func.func @transform_3(%arg0: i32) -> (i32, i32) {
    %c0_i32 = arith.constant 0 : i32
    %c0_i32_0 = arith.constant 0 : i32
    %c0_i32_1 = arith.constant 0 : i32
    return %c0_i32, %c0_i32_0 : i32, i32
  }
  func.func @transform_4(%arg0: i32) -> (i32, i32) {
    %c0_i32 = arith.constant 0 : i32
    %c0_i32_0 = arith.constant 0 : i32
    %c0_i32_1 = arith.constant 0 : i32
    return %c0_i32, %c0_i32_0 : i32, i32
  }
  func.func @transform_5(%arg0: i32) -> (i32, i32) {
    %c0_i32 = arith.constant 0 : i32
    %c0_i32_0 = arith.constant 0 : i32
    %c0_i32_1 = arith.constant 0 : i32
    return %c0_i32, %c0_i32_0 : i32, i32
  }
  func.func @transform_6(%arg0: i32) -> (i32, i32) {
    %c0_i32 = arith.constant 0 : i32
    %c0_i32_0 = arith.constant 0 : i32
    %c0_i32_1 = arith.constant 0 : i32
    return %c0_i32, %c0_i32_0 : i32, i32
  }
  func.func @transform_7(%arg0: i32) -> (i32, i32) {
    %c0_i32 = arith.constant 0 : i32
    %c0_i32_0 = arith.constant 0 : i32
    return %arg0, %c0_i32 : i32, i32
  }
}

</mosaic_0001>

<llo_original>
// kernel: tpu_custom_call.1
$region0: #{tpu_custom_call.1}
  #allocation0 [shape = 'u32[]', space=smem, size = 0x4, offset = 0x4, fixed_abs, tag = 'smem constant byte address 0x4 - core index']
  #allocation1 [shape = 'u32[144,128]{1,0:T(1,128)}', space=vmem, size = 0x12000, scoped, tag = 'internal scratch']
  %s0 = inlined_call_operand.vmem [shape: f32[8,12], index: 0, kind: input, shape index: {}]
  %s1 = inlined_call_operand.vmem [shape: bf16[12,256], index: 1, kind: input, shape index: {}]
  %s2 = inlined_call_operand.vmem [shape: f32[1,256], index: 2, kind: input, shape index: {}]
  %s3 = inlined_call_operand.hbm [shape: bf16[256,256], index: 3, kind: input, shape index: {}]
  %s4 = inlined_call_operand.vmem [shape: f32[1,256], index: 4, kind: input, shape index: {}]
  %s5 = inlined_call_operand.vmem [shape: bf16[256,8], index: 5, kind: input, shape index: {}]
  %s6 = inlined_call_operand.vmem [shape: f32[1,8], index: 6, kind: input, shape index: {}]
  %s7 = inlined_call_operand.hbm [shape: f32[8,8], index: 7, kind: output, shape index: {}]
  %s8 = sld [smem:[#allocation0]]
  $region42: #{tpu_custom_call.1} parent=0
    _
  %s10 = ssub.s32 1, %s8
  %s11 = scalar_select 0, %s10, %s8
  $region1: #{tpu_custom_call.1} parent=0
    #allocation2 [shape = 'u8[131072]{0}', space=vmem, size = 0x20000, scoped, tag = 'input window, operand 3, single buffered']
    #allocation3 [shape = 's32[1]{0}', space=sflag, size = 0x4, scoped, tag = 'scoped memory for tpu_custom_call.1']
    #allocation4 [shape = 's32[1]{0}', space=sflag, size = 0x4, scoped, tag = 'scoped memory for tpu_custom_call.1']
    #allocation5 [shape = 'u8[4096]{0}', space=vmem, size = 0x1000, scoped, tag = 'output window, operand 0, single buffered']
    %12 = vsyncpa [#allocation3], 0
    %13 = vsyncpa [#allocation4], 0
    // Predicated region
    $region2: #{tpu_custom_call.1} parent=1 // pred_check
      _
    $region3: #{tpu_custom_call.1} parent=1 // pred_check_branch
      %15 = sbr.rel (0) target = $region5
    $region4: #{tpu_custom_call.1} parent=1 // pred_region
      _
    $region5: #{tpu_custom_call.1} parent=1 // pred_fallthru
      _
    // Predicated region
    $region6: #{tpu_custom_call.1} parent=1 // pred_check
      _
    $region7: #{tpu_custom_call.1} parent=1 // pred_check_branch
      %17 = sbr.rel (0) target = $region9
    $region8: #{tpu_custom_call.1} parent=1 // pred_region
      _
    $region9: #{tpu_custom_call.1} parent=1 // pred_fallthru
      _
    // Predicated region
    $region10: #{tpu_custom_call.1} parent=1 // pred_check
      _
    $region11: #{tpu_custom_call.1} parent=1 // pred_check_branch
      %19 = sbr.rel (0) target = $region13
    $region12: #{tpu_custom_call.1} parent=1 // pred_region
      _
    $region13: #{tpu_custom_call.1} parent=1 // pred_fallthru
      _
    // Predicated region
    $region14: #{tpu_custom_call.1} parent=1 // pred_check
      _
    $region15: #{tpu_custom_call.1} parent=1 // pred_check_branch
      %21 = sbr.rel (0) target = $region17
    $region16: #{tpu_custom_call.1} parent=1 // pred_region
      %s23 = ssub.s32 4096, 4096
      %24 = vsyncadd [#allocation3], %s23
      %s25 = sshll.u32 [#allocation2], 4
      %s26 = int_to_ptr.vmem [resolvable:$true] %s25
      %31 = dma.hbm_to_vmem [thread:$0]  %s3, 4096, %s26, [#allocation3], 128, 128, 8
    $region17: #{tpu_custom_call.1} parent=1 // pred_fallthru
      _
    // Predicated region
    $region18: #{tpu_custom_call.1} parent=1 // pred_check
      _
    $region19: #{tpu_custom_call.1} parent=1 // pred_check_branch
      %33 = sbr.rel (0) target = $region21
    $region20: #{tpu_custom_call.1} parent=1 // pred_region
      _
    $region21: #{tpu_custom_call.1} parent=1 // pred_fallthru
      _
    // Predicated region
    $region22: #{tpu_custom_call.1} parent=1 // pred_check
      _
    $region23: #{tpu_custom_call.1} parent=1 // pred_check_branch
      %35 = sbr.rel (0) target = $region25
    $region24: #{tpu_custom_call.1} parent=1 // pred_region
      _
    $region25: #{tpu_custom_call.1} parent=1 // pred_fallthru
      _
    // Predicated region
    $region26: #{tpu_custom_call.1} parent=1 // pred_check
      _
    $region27: #{tpu_custom_call.1} parent=1 // pred_check_branch
      %37 = sbr.rel (0) target = $region29
    $region28: #{tpu_custom_call.1} parent=1 // pred_region
      _
    $region29: #{tpu_custom_call.1} parent=1 // pred_fallthru
      _
    // Predicated region
    $region30: #{tpu_custom_call.1} parent=1 // pred_check
      _
    $region31: #{tpu_custom_call.1} parent=1 // pred_check_branch
      %39 = sbr.rel (0) target = $region33
    $region32: #{tpu_custom_call.1} parent=1 // pred_region
      %40 = dma.done [#allocation3], 4096
    $region33: #{tpu_custom_call.1} parent=1 // pred_fallthru
      _
    %v42 = vld [vmem:[%s0] sm:$0xff]
    %v43 = vpack.c.bf16 %v42, %v42
    %v44 = vld [vmem:[%s1] sm:$0xff]
    %v45 = vld [vmem:[%s1 + $0x8] sm:$0x33]
    %v46 = vld [vmem:[%s2] sm:$0x3]
    %v48 = vlaneseq
    %v49 = vshrl.u32 %v48, 7
    %v50 = vsub.s32 0, %v49
    %v51 = vrot.slane %v46, %v50
    %v52 = vlaneseq
    %v53 = vshrl.u32 %v52, 7
    %v54 = vsub.s32 1, %v53
    %v55 = vrot.slane %v46, %v54
    %v60 = vunpack.c.l.b16 %v44
    %v61 = vunpack.c.h.b16 %v44
    %v62 = vunpack.c.l.b16 %v45
    %v63 = vunpack.c.h.b16 %v45
    %v64 = vpack.c.b16 %v62, %v60
    %v65 = vpack.c.b16 %v63, %v61
    %vm66 = vcmask 97280
    %v68 = vsel %vm66, %v43, 0
    %vm70 = vcmask 1045504
    %v72 = vsel %vm70, %v64, 0
    %v75 = vsel %vm70, %v65, 0
    %77 = vmatprep.subr.bf16.mxu0 0
    %78 = vmatpush1.bf16.msra.mxu0 0
    %79 = vmatprep.subr.bf16.mxu0 0
    %80 = vmatpush1.bf16.msra.mxu0 0
    %81 = vmatprep.subr.bf16.mxu0 0
    %82 = vmatpush1.bf16.msra.mxu0 0
    %83 = vmatprep.subr.bf16.mxu0 0
    %84 = vmatpush1.bf16.msra.mxu0 0
    %85 = vmatprep.subr.bf16.mxu0 0
    %86 = vmatpush1.bf16.msra.mxu0 0
    %87 = vmatprep.subr.bf16.mxu0 0
    %88 = vmatpush1.bf16.msra.mxu0 0
    %89 = vmatprep.subr.bf16.mxu0 0
    %90 = vmatpush1.bf16.msra.mxu0 0
    %91 = vmatprep.subr.bf16.mxu0 %v75
    %92 = vmatpush1.bf16.msra.mxu0 %v72
    %93 = vmatprep.subr.bf16.mxu0 0
    %94 = vmatpush2.bf16.msra.mxu0 0
    %95 = vmatprep.subr.bf16.mxu0 0
    %96 = vmatpush2.bf16.msra.mxu0 0
    %97 = vmatprep.subr.bf16.mxu0 0
    %98 = vmatpush2.bf16.msra.mxu0 0
    %99 = vmatprep.subr.bf16.mxu0 0
    %100 = vmatpush2.bf16.msra.mxu0 0
    %101 = vmatprep.subr.bf16.mxu0 0
    %102 = vmatpush2.bf16.msra.mxu0 0
    %103 = vmatprep.subr.bf16.mxu0 0
    %104 = vmatpush2.bf16.msra.mxu0 0
    %105 = vmatprep.subr.bf16.mxu0 0
    %106 = vmatpush2.bf16.msra.mxu0 0
    %107 = vmatprep.subr.bf16.mxu0 0
    %108 = vmatpush2.bf16.msra.mxu0 0
    %109 = vmatprep.mubr.bf16.mxu0 0
    %110 = vmatmul.mubr.bf16.gmra.mxu0 %v68
    %v111 = vpop.f32.mrf.mxu0
    %v112 = vadd.f32 %v51, %v111
    %v113 = vpop.f32.mrf.mxu0
    %v114 = vadd.f32 %v55, %v113
    %v115 = vpop.f32.mrf.mxu0
    %v116 = vpop.f32.mrf.mxu0
    %117 = vdwg.mxu0
    %v118 = vmul.f32 %v112, 0.01
    %v119 = vmul.f32 %v114, 0.01
    %v120 = vmax.f32 %v112, %v118
    %v121 = vmax.f32 %v114, %v119
    %v122 = vpack.c.bf16 %v120, %v120
    %v123 = vpack.c.bf16 %v121, %v121
    %v124 = vld [vmem:[#allocation2] sm:$0xff]
    %v125 = vld [vmem:[#allocation2 + $0x8] sm:$0xff]
    %v126 = vld [vmem:[#allocation2 + $0x10] sm:$0xff]
    %v127 = vld [vmem:[#allocation2 + $0x18] sm:$0xff]
    %v128 = vld [vmem:[#allocation2 + $0x20] sm:$0xff]
    %v129 = vld [vmem:[#allocation2 + $0x28] sm:$0xff]
    %v130 = vld [vmem:[#allocation2 + $0x30] sm:$0xff]
    %v131 = vld [vmem:[#allocation2 + $0x38] sm:$0xff]
    %v132 = vld [vmem:[#allocation2 + $0x40] sm:$0xff]
    %v133 = vld [vmem:[#allocation2 + $0x48] sm:$0xff]
    %v134 = vld [vmem:[#allocation2 + $0x50] sm:$0xff]
    %v135 = vld [vmem:[#allocation2 + $0x58] sm:$0xff]
    %v136 = vld [vmem:[#allocation2 + $0x60] sm:$0xff]
    %v137 = vld [vmem:[#allocation2 + $0x68] sm:$0xff]
    %v138 = vld [vmem:[#allocation2 + $0x70] sm:$0xff]
    %v139 = vld [vmem:[#allocation2 + $0x78] sm:$0xff]
    %v140 = vld [vmem:[#allocation2 + $0x80] sm:$0xff]
    %v141 = vld [vmem:[#allocation2 + $0x88] sm:$0xff]
    %v142 = vld [vmem:[#allocation2 + $0x90] sm:$0xff]
    %v143 = vld [vmem:[#allocation2 + $0x98] sm:$0xff]
    %v144 = vld [vmem:[#allocation2 + $0xa0] sm:$0xff]
    %v145 = vld [vmem:[#allocation2 + $0xa8] sm:$0xff]
    %v146 = vld [vmem:[#allocation2 + $0xb0] sm:$0xff]
    %v147 = vld [vmem:[#allocation2 + $0xb8] sm:$0xff]
    %v148 = vld [vmem:[#allocation2 + $0xc0] sm:$0xff]
    %v149 = vld [vmem:[#allocation2 + $0xc8] sm:$0xff]
    %v150 = vld [vmem:[#allocation2 + $0xd0] sm:$0xff]
    %v151 = vld [vmem:[#allocation2 + $0xd8] sm:$0xff]
    %v152 = vld [vmem:[#allocation2 + $0xe0] sm:$0xff]
    %v153 = vld [vmem:[#allocation2 + $0xe8] sm:$0xff]
    %v154 = vld [vmem:[#allocation2 + $0xf0] sm:$0xff]
    %v155 = vld [vmem:[#allocation2 + $0xf8] sm:$0xff]
    %v156 = vld [vmem:[%s4] sm:$0x3]
    %v158 = vlaneseq
    %v159 = vshrl.u32 %v158, 7
    %v160 = vsub.s32 0, %v159
    %v161 = vrot.slane %v156, %v160
    %v162 = vlaneseq
    %v163 = vshrl.u32 %v162, 7
    %v164 = vsub.s32 1, %v163
    %v165 = vrot.slane %v156, %v164
    %v200 = vunpack.c.l.b16 %v124
    %v201 = vunpack.c.h.b16 %v124
    %v202 = vunpack.c.l.b16 %v125
    %v203 = vunpack.c.h.b16 %v125
    %v204 = vunpack.c.l.b16 %v126
    %v205 = vunpack.c.h.b16 %v126
    %v206 = vunpack.c.l.b16 %v127
    %v207 = vunpack.c.h.b16 %v127
    %v208 = vunpack.c.l.b16 %v128
    %v209 = vunpack.c.h.b16 %v128
    %v210 = vunpack.c.l.b16 %v129
    %v211 = vunpack.c.h.b16 %v129
    %v212 = vunpack.c.l.b16 %v130
    %v213 = vunpack.c.h.b16 %v130
    %v214 = vunpack.c.l.b16 %v131
    %v215 = vunpack.c.h.b16 %v131
    %v216 = vunpack.c.l.b16 %v132
    %v217 = vunpack.c.h.b16 %v132
    %v218 = vunpack.c.l.b16 %v133
    %v219 = vunpack.c.h.b16 %v133
    %v220 = vunpack.c.l.b16 %v134
    %v221 = vunpack.c.h.b16 %v134
    %v222 = vunpack.c.l.b16 %v135
    %v223 = vunpack.c.h.b16 %v135
    %v224 = vunpack.c.l.b16 %v136
    %v225 = vunpack.c.h.b16 %v136
    %v226 = vunpack.c.l.b16 %v137
    %v227 = vunpack.c.h.b16 %v137
    %v228 = vunpack.c.l.b16 %v138
    %v229 = vunpack.c.h.b16 %v138
    %v230 = vunpack.c.l.b16 %v139
    %v231 = vunpack.c.h.b16 %v139
    %v232 = vunpack.c.l.b16 %v140
    %v233 = vunpack.c.h.b16 %v140
    %v234 = vunpack.c.l.b16 %v141
    %v235 = vunpack.c.h.b16 %v141
    %v236 = vunpack.c.l.b16 %v142
    %v237 = vunpack.c.h.b16 %v142
    %v238 = vunpack.c.l.b16 %v143
    %v239 = vunpack.c.h.b16 %v143
    %v240 = vunpack.c.l.b16 %v144
    %v241 = vunpack.c.h.b16 %v144
    %v242 = vunpack.c.l.b16 %v145
    %v243 = vunpack.c.h.b16 %v145
    %v244 = vunpack.c.l.b16 %v146
    %v245 = vunpack.c.h.b16 %v146
    %v246 = vunpack.c.l.b16 %v147
    %v247 = vunpack.c.h.b16 %v147
    %v248 = vunpack.c.l.b16 %v148
    %v249 = vunpack.c.h.b16 %v148
    %v250 = vunpack.c.l.b16 %v149
    %v251 = vunpack.c.h.b16 %v149
    %v252 = vunpack.c.l.b16 %v150
    %v253 = vunpack.c.h.b16 %v150
    %v254 = vunpack.c.l.b16 %v151
    %v255 = vunpack.c.h.b16 %v151
    %v256 = vunpack.c.l.b16 %v152
    %v257 = vunpack.c.h.b16 %v152
    %v258 = vunpack.c.l.b16 %v153
    %v259 = vunpack.c.h.b16 %v153
    %v260 = vunpack.c.l.b16 %v154
    %v261 = vunpack.c.h.b16 %v154
    %v262 = vunpack.c.l.b16 %v155
    %v263 = vunpack.c.h.b16 %v155
    %v264 = vpack.c.b16 %v202, %v200
    %v265 = vpack.c.b16 %v203, %v201
    %v266 = vpack.c.b16 %v206, %v204
    %v267 = vpack.c.b16 %v207, %v205
    %v268 = vpack.c.b16 %v210, %v208
    %v269 = vpack.c.b16 %v211, %v209
    %v270 = vpack.c.b16 %v214, %v212
    %v271 = vpack.c.b16 %v215, %v213
    %v272 = vpack.c.b16 %v218, %v216
    %v273 = vpack.c.b16 %v219, %v217
    %v274 = vpack.c.b16 %v222, %v220
    %v275 = vpack.c.b16 %v223, %v221
    %v276 = vpack.c.b16 %v226, %v224
    %v277 = vpack.c.b16 %v227, %v225
    %v278 = vpack.c.b16 %v230, %v228
    %v279 = vpack.c.b16 %v231, %v229
    %v280 = vpack.c.b16 %v234, %v232
    %v281 = vpack.c.b16 %v235, %v233
    %v282 = vpack.c.b16 %v238, %v236
    %v283 = vpack.c.b16 %v239, %v237
    %v284 = vpack.c.b16 %v242, %v240
    %v285 = vpack.c.b16 %v243, %v241
    %v286 = vpack.c.b16 %v246, %v244
    %v287 = vpack.c.b16 %v247, %v245
    %v288 = vpack.c.b16 %v250, %v248
    %v289 = vpack.c.b16 %v251, %v249
    %v290 = vpack.c.b16 %v254, %v252
    %v291 = vpack.c.b16 %v255, %v253
    %v292 = vpack.c.b16 %v258, %v256
    %v293 = vpack.c.b16 %v259, %v257
    %v294 = vpack.c.b16 %v262, %v260
    %v295 = vpack.c.b16 %v263, %v261
    %328 = vmatprep.subr.bf16.mxu0 %v279
    %329 = vmatpush1.bf16.msra.mxu0 %v278
    %330 = vmatprep.subr.bf16.mxu0 %v277
    %331 = vmatpush1.bf16.msra.mxu0 %v276
    %332 = vmatprep.subr.bf16.mxu0 %v275
    %333 = vmatpush1.bf16.msra.mxu0 %v274
    %334 = vmatprep.subr.bf16.mxu0 %v273
    %335 = vmatpush1.bf16.msra.mxu0 %v272
    %336 = vmatprep.subr.bf16.mxu0 %v271
    %337 = vmatpush1.bf16.msra.mxu0 %v270
    %338 = vmatprep.subr.bf16.mxu0 %v269
    %339 = vmatpush1.bf16.msra.mxu0 %v268
    %340 = vmatprep.subr.bf16.mxu0 %v267
    %341 = vmatpush1.bf16.msra.mxu0 %v266
    %342 = vmatprep.subr.bf16.mxu0 %v265
    %343 = vmatpush1.bf16.msra.mxu0 %v264
    %344 = vmatprep.subr.bf16.mxu0 %v295
    %345 = vmatpush2.bf16.msra.mxu0 %v294
    %346 = vmatprep.subr.bf16.mxu0 %v293
    %347 = vmatpush2.bf16.msra.mxu0 %v292
    %348 = vmatprep.subr.bf16.mxu0 %v291
    %349 = vmatpush2.bf16.msra.mxu0 %v290
    %350 = vmatprep.subr.bf16.mxu0 %v289
    %351 = vmatpush2.bf16.msra.mxu0 %v288
    %352 = vmatprep.subr.bf16.mxu0 %v287
    %353 = vmatpush2.bf16.msra.mxu0 %v286
    %354 = vmatprep.subr.bf16.mxu0 %v285
    %355 = vmatpush2.bf16.msra.mxu0 %v284
    %356 = vmatprep.subr.bf16.mxu0 %v283
    %357 = vmatpush2.bf16.msra.mxu0 %v282
    %358 = vmatprep.subr.bf16.mxu0 %v281
    %359 = vmatpush2.bf16.msra.mxu0 %v280
    %360 = vmatprep.mubr.bf16.mxu0 %v123
    %361 = vmatmul.mubr.bf16.gmra.mxu0 %v122
    %v362 = vpop.f32.mrf.mxu0
    %v363 = vadd.f32 %v161, %v362
    %v364 = vpop.f32.mrf.mxu0
    %v365 = vadd.f32 %v165, %v364
    %v366 = vpop.f32.mrf.mxu0
    %v367 = vpop.f32.mrf.mxu0
    %368 = vdwg.mxu0
    %v369 = vmul.f32 %v363, 0.01
    %v370 = vmul.f32 %v365, 0.01
    %v371 = vmax.f32 %v363, %v369
    %v372 = vmax.f32 %v365, %v370
    %v373 = vpack.c.bf16 %v371, %v371
    %v374 = vpack.c.bf16 %v372, %v372
    %v375 = vld [vmem:[%s5] sm:$0xf]
    %v376 = vld [vmem:[%s5 + $0x4] sm:$0xf]
    %v377 = vld [vmem:[%s5 + $0x8] sm:$0xf]
    %v378 = vld [vmem:[%s5 + $0xc] sm:$0xf]
    %v379 = vld [vmem:[%s5 + $0x10] sm:$0xf]
    %v380 = vld [vmem:[%s5 + $0x14] sm:$0xf]
    %v381 = vld [vmem:[%s5 + $0x18] sm:$0xf]
    %v382 = vld [vmem:[%s5 + $0x1c] sm:$0xf]
    %v383 = vld [vmem:[%s5 + $0x20] sm:$0xf]
    %v384 = vld [vmem:[%s5 + $0x24] sm:$0xf]
    %v385 = vld [vmem:[%s5 + $0x28] sm:$0xf]
    %v386 = vld [vmem:[%s5 + $0x2c] sm:$0xf]
    %v387 = vld [vmem:[%s5 + $0x30] sm:$0xf]
    %v388 = vld [vmem:[%s5 + $0x34] sm:$0xf]
    %v389 = vld [vmem:[%s5 + $0x38] sm:$0xf]
    %v390 = vld [vmem:[%s5 + $0x3c] sm:$0xf]
    %v391 = vld [vmem:[%s5 + $0x40] sm:$0xf]
    %v392 = vld [vmem:[%s5 + $0x44] sm:$0xf]
    %v393 = vld [vmem:[%s5 + $0x48] sm:$0xf]
    %v394 = vld [vmem:[%s5 + $0x4c] sm:$0xf]
    %v395 = vld [vmem:[%s5 + $0x50] sm:$0xf]
    %v396 = vld [vmem:[%s5 + $0x54] sm:$0xf]
    %v397 = vld [vmem:[%s5 + $0x58] sm:$0xf]
    %v398 = vld [vmem:[%s5 + $0x5c] sm:$0xf]
    %v399 = vld [vmem:[%s5 + $0x60] sm:$0xf]
    %v400 = vld [vmem:[%s5 + $0x64] sm:$0xf]
    %v401 = vld [vmem:[%s5 + $0x68] sm:$0xf]
    %v402 = vld [vmem:[%s5 + $0x6c] sm:$0xf]
    %v403 = vld [vmem:[%s5 + $0x70] sm:$0xf]
    %v404 = vld [vmem:[%s5 + $0x74] sm:$0xf]
    %v405 = vld [vmem:[%s5 + $0x78] sm:$0xf]
    %v406 = vld [vmem:[%s5 + $0x7c] sm:$0xf]
    %v407 = vld [vmem:[%s6] sm:$0x1]
    %v409 = vlaneseq
    %v410 = vshrl.u32 %v409, 7
    %v411 = vsub.s32 0, %v410
    %v412 = vrot.slane %v407, %v411
    %v446 = vunpack.c.l.b16 %v375
    %v447 = vunpack.c.l.b16 %v376
    %v448 = vunpack.c.l.b16 %v377
    %v449 = vunpack.c.l.b16 %v378
    %v450 = vunpack.c.l.b16 %v379
    %v451 = vunpack.c.l.b16 %v380
    %v452 = vunpack.c.l.b16 %v381
    %v453 = vunpack.c.l.b16 %v382
    %v454 = vunpack.c.l.b16 %v383
    %v455 = vunpack.c.l.b16 %v384
    %v456 = vunpack.c.l.b16 %v385
    %v457 = vunpack.c.l.b16 %v386
    %v458 = vunpack.c.l.b16 %v387
    %v459 = vunpack.c.l.b16 %v388
    %v460 = vunpack.c.l.b16 %v389
    %v461 = vunpack.c.l.b16 %v390
    %v462 = vunpack.c.l.b16 %v391
    %v463 = vunpack.c.l.b16 %v392
    %v464 = vunpack.c.l.b16 %v393
    %v465 = vunpack.c.l.b16 %v394
    %v466 = vunpack.c.l.b16 %v395
    %v467 = vunpack.c.l.b16 %v396
    %v468 = vunpack.c.l.b16 %v397
    %v469 = vunpack.c.l.b16 %v398
    %v470 = vunpack.c.l.b16 %v399
    %v471 = vunpack.c.l.b16 %v400
    %v472 = vunpack.c.l.b16 %v401
    %v473 = vunpack.c.l.b16 %v402
    %v474 = vunpack.c.l.b16 %v403
    %v475 = vunpack.c.l.b16 %v404
    %v476 = vunpack.c.l.b16 %v405
    %v477 = vunpack.c.l.b16 %v406
    %v478 = vpack.c.b16 %v447, %v446
    %v479 = vpack.c.b16 %v449, %v448
    %v480 = vpack.c.b16 %v451, %v450
    %v481 = vpack.c.b16 %v453, %v452
    %v482 = vpack.c.b16 %v455, %v454
    %v483 = vpack.c.b16 %v457, %v456
    %v484 = vpack.c.b16 %v459, %v458
    %v485 = vpack.c.b16 %v461, %v460
    %v486 = vpack.c.b16 %v463, %v462
    %v487 = vpack.c.b16 %v465, %v464
    %v488 = vpack.c.b16 %v467, %v466
    %v489 = vpack.c.b16 %v469, %v468
    %v490 = vpack.c.b16 %v471, %v470
    %v491 = vpack.c.b16 %v473, %v472
    %v492 = vpack.c.b16 %v475, %v474
    %v493 = vpack.c.b16 %v477, %v476
    %510 = vmatprep.subr.bf16.mxu0 0
    %511 = vmatpush1.bf16.msra.mxu0 %v485
    %512 = vmatprep.subr.bf16.mxu0 0
    %513 = vmatpush1.bf16.msra.mxu0 %v484
    %514 = vmatprep.subr.bf16.mxu0 0
    %515 = vmatpush1.bf16.msra.mxu0 %v483
    %516 = vmatprep.subr.bf16.mxu0 0
    %517 = vmatpush1.bf16.msra.mxu0 %v482
    %518 = vmatprep.subr.bf16.mxu0 0
    %519 = vmatpush1.bf16.msra.mxu0 %v481
    %520 = vmatprep.subr.bf16.mxu0 0
    %521 = vmatpush1.bf16.msra.mxu0 %v480
    %522 = vmatprep.subr.bf16.mxu0 0
    %523 = vmatpush1.bf16.msra.mxu0 %v479
    %524 = vmatprep.subr.bf16.mxu0 0
    %525 = vmatpush1.bf16.msra.mxu0 %v478
    %526 = vmatprep.subr.bf16.mxu0 0
    %527 = vmatpush2.bf16.msra.mxu0 %v493
    %528 = vmatprep.subr.bf16.mxu0 0
    %529 = vmatpush2.bf16.msra.mxu0 %v492
    %530 = vmatprep.subr.bf16.mxu0 0
    %531 = vmatpush2.bf16.msra.mxu0 %v491
    %532 = vmatprep.subr.bf16.mxu0 0
    %533 = vmatpush2.bf16.msra.mxu0 %v490
    %534 = vmatprep.subr.bf16.mxu0 0
    %535 = vmatpush2.bf16.msra.mxu0 %v489
    %536 = vmatprep.subr.bf16.mxu0 0
    %537 = vmatpush2.bf16.msra.mxu0 %v488
    %538 = vmatprep.subr.bf16.mxu0 0
    %539 = vmatpush2.bf16.msra.mxu0 %v487
    %540 = vmatprep.subr.bf16.mxu0 0
    %541 = vmatpush2.bf16.msra.mxu0 %v486
    %542 = vmatprep.mubr.bf16.mxu0 %v374
    %543 = vmatmul.mubr.bf16.gmra.mxu0 %v373
    %v544 = vpop.f32.mrf.mxu0
    %v545 = vadd.f32 %v412, %v544
    %v546 = vpop.f32.mrf.mxu0
    %v547 = vpop.f32.mrf.mxu0
    %v548 = vpop.f32.mrf.mxu0
    %549 = vdwg.mxu0
    %vm550 = vcmask 64512
    %551 = vst.msk [vmem:[#allocation5] sm:$0xff] %vm550, %v545
    // Predicated region
    $region34: #{tpu_custom_call.1} parent=1 // pred_check
      _
    $region35: #{tpu_custom_call.1} parent=1 // pred_check_branch
      %553 = sbr.rel (0) target = $region37
    $region36: #{tpu_custom_call.1} parent=1 // pred_region
      %s555 = ssub.s32 128, 128
      %556 = vsyncadd [#allocation4], %s555
      %s558 = sshll.u32 [#allocation5], 4
      %s559 = int_to_ptr.vmem [resolvable:$true] %s558
      %561 = dma.vmem_to_hbm [thread:$0]  %s559, 128, %s7, [#allocation4]
    $region37: #{tpu_custom_call.1} parent=1 // pred_fallthru
      _
    // Predicated region
    $region38: #{tpu_custom_call.1} parent=1 // pred_check
      _
    $region39: #{tpu_custom_call.1} parent=1 // pred_check_branch
      %563 = sbr.rel (0) target = $region41
    $region40: #{tpu_custom_call.1} parent=1 // pred_region
      %564 = dma.done [#allocation4], 128
    $region41: #{tpu_custom_call.1} parent=1 // pred_fallthru
      _
    %565 = vsyncpa [#allocation3], 1
    %566 = vsyncpa [#allocation4], 1

</llo_original>
